<compile_context>
chip_gen: v7x
topology: tpu7x:2x2x1
jax: 0.10.0
libtpu: 0.0.40
codegen_flags: <defaults>
</compile_context>

<pallas_src>
import functools

import jax
import jax.numpy as jnp
from jax.experimental import pallas as pl
from jax.experimental.pallas import tpu as pltpu


def _round_up(n, m):
    return ((n + m - 1) // m) * m


def _use_bf16_elementwise():
    """bf16 VPU exists on v6e / v7x; v5e (and older) would pay convert ops."""
    try:
        kind = jax.devices()[0].device_kind.lower()
    except Exception:
        return False
    return any(tag in kind for tag in ("v6", "v7", "7x"))


def _choose_block_b(B, max_block_b):
    """Batch tile: multiple of 8 sublanes, fewest fat steps (per-step overhead
    ~0.35 us dominates here), but >= 2 steps once B >= 512 so the "parallel"
    grid axis can be sharded across v7x's two TensorCores."""
    B8 = _round_up(B, 8)
    if B8 < 512:
        return min(B8, _round_up(max_block_b, 8))
    n_steps = max(2, -(-B8 // max_block_b))            # ceil-div, at least 2
    return _round_up(-(-B8 // n_steps), 8)


def _double_critic_kernel(xu_ref, w1_ref, w2_ref, misc_ref, q_ref, *, bf16_act):
    H = w2_ref.shape[-1]

    # cast to bf16 in-kernel (keeps the wrapper free of extra XLA ops)
    xu = xu_ref[...].astype(jnp.bfloat16)              # [bb, state+act]

    misc = misc_ref[...]                                # [4, 2H] f32
    b1 = misc[0:1, :]                                   # [1, 2H]
    b2 = misc[1:2, :]                                   # [1, 2H]
    w3 = misc[2:3, :]                                   # [1, 2H]
    b3 = misc[3:4, 0:2]                                 # [1, 2]

    # ---- layer 1: both critics fused along the output (lane) axis, ONE dot
    h1 = jnp.dot(xu, w1_ref[...], preferred_element_type=jnp.float32) + b1
    if bf16_act:
        # packed-bf16 ReLU on the largest intermediate (v6e/v7x VPU)
        h1 = jnp.maximum(h1.astype(jnp.bfloat16), 0.0)
    else:
        h1 = jnp.maximum(h1, 0.0).astype(jnp.bfloat16)
    h1a = h1[:, :H]                                     # static 256-lane slices
    h1b = h1[:, H:]

    # ---- layer 2: per-critic (different inputs -> separate dots)
    h2a = jnp.maximum(
        jnp.dot(h1a, w2_ref[0], preferred_element_type=jnp.float32) + b2[:, :H],
        0.0)
    h2b = jnp.maximum(
        jnp.dot(h1b, w2_ref[1], preferred_element_type=jnp.float32) + b2[:, H:],
        0.0)

    # ---- layer 3: N=1 head as VPU multiply + lane (XLU) reduction, no MXU
    q1 = jnp.sum(h2a * w3[:, :H], axis=-1, keepdims=True)   # [bb, 1] f32
    q2 = jnp.sum(h2b * w3[:, H:], axis=-1, keepdims=True)   # [bb, 1] f32

    # single [bb, 2] store (one vst sequence instead of two 1-lane writes)
    q_ref[...] = jnp.concatenate([q1, q2], axis=-1) + b3


def init_critic_params(key, input_dim, hidden_dim=256, output_dim=1):
    """Deterministic synthetic init (PyTorch-Linear-like uniform fan-in)."""
    ks = jax.random.split(key, 6)

    def lin(kw, kb, fan_in, fan_out):
        bound = 1.0 / jnp.sqrt(jnp.float32(fan_in))
        w = jax.random.uniform(kw, (fan_in, fan_out), jnp.float32, -bound, bound)
        b = jax.random.uniform(kb, (1, fan_out), jnp.float32, -bound, bound)
        return w, b

    w1, b1 = lin(ks[0], ks[1], input_dim, hidden_dim)
    w2, b2 = lin(ks[2], ks[3], hidden_dim, hidden_dim)
    w3, b3 = lin(ks[4], ks[5], hidden_dim, output_dim)
    return (w1, b1, w2, b2, w3, b3)


def pack_params(params1, params2):
    """One-time repack into the kernel layout (done at init, not per step).

    Returns (w1 [D, 2H] bf16, w2 [2, H, H] bf16, misc [4, 2H] f32) where
      misc row 0 = [b1a | b1b], row 1 = [b2a | b2b],
      misc row 2 = [w3a^T | w3b^T], row 3 = [b3a, b3b, 0, ...].
    """
    w1a, b1a, w2a, b2a, w3a, b3a = params1
    w1b, b1b, w2b, b2b, w3b, b3b = params2
    H = w2a.shape[0]

    w1 = jnp.concatenate([w1a, w1b], axis=1).astype(jnp.bfloat16)       # [D, 2H]
    w2 = jnp.stack([w2a, w2b], axis=0).astype(jnp.bfloat16)             # [2, H, H]

    b1 = jnp.concatenate([b1a, b1b], axis=1)                            # [1, 2H]
    b2 = jnp.concatenate([b2a, b2b], axis=1)                            # [1, 2H]
    w3 = jnp.concatenate([w3a.reshape(1, -1), w3b.reshape(1, -1)], 1)   # [1, 2H]
    b3 = jnp.zeros((1, 2 * H), jnp.float32)
    b3 = b3.at[0, 0].set(b3a.reshape(())).at[0, 1].set(b3b.reshape(()))
    misc = jnp.concatenate([b1, b2, w3, b3], axis=0).astype(jnp.float32)  # [4, 2H]

    return (w1, w2, misc)


def double_critic_forward(x, u, packed_params, *, max_block_b=1024):
    """x: [B, state_dim], u: [B, act_dim]. Returns (q1, q2), each [B, 1]."""
    B = x.shape[0]
    w1, w2, misc = packed_params
    D = w1.shape[0]             # state_dim + act_dim
    H = w2.shape[-1]
    H2 = 2 * H

    # single tiny concat in the wrapper -> one K=16 layer-1 dot in the kernel;
    # no dtype cast / batch padding here (done / handled inside the kernel).
    xu = jnp.concatenate([x, u], axis=-1)                # [B, D] f32

    block_b = _choose_block_b(B, max_block_b)
    grid = (pl.cdiv(B, block_b),)                        # ragged last block OK

    kernel = functools.partial(_double_critic_kernel,
                               bf16_act=_use_bf16_elementwise())

    def pinned(shape):
        # full-array block, same block every grid step -> stays resident
        return pl.BlockSpec(shape, lambda i: (0,) * len(shape))

    in_specs = [
        pl.BlockSpec((block_b, D), lambda i: (i, 0)),    # xu  (tiled over batch)
        pinned((D, H2)),                                 # w1
        pinned((2, H, H)),                               # w2 (both critics)
        pinned((4, H2)),                                 # misc (biases + w3 rows)
    ]
    out_specs = pl.BlockSpec((block_b, 2), lambda i: (i, 0))

    flops = 2 * B * (D * H2 + 2 * H * H + 2 * H)
    bytes_accessed = (int(xu.size) * 4 + int(w1.size) * 2 + int(w2.size) * 2
                      + int(misc.size) * 4 + B * 2 * 4)
    cost = pl.CostEstimate(flops=flops, transcendentals=0,
                           bytes_accessed=bytes_accessed)

    q = pl.pallas_call(
        kernel,
        out_shape=jax.ShapeDtypeStruct((B, 2), jnp.float32),
        grid=grid,
        in_specs=in_specs,
        out_specs=out_specs,
        compiler_params=pltpu.CompilerParams(
            dimension_semantics=("parallel",),   # shard batch across v7x TCs
            vmem_limit_bytes=32 * 1024 * 1024,   # footprint is < 10 MiB anyway
        ),
        cost_estimate=cost,
    )(xu, w1, w2, misc)

    return q[:, 0:1], q[:, 1:2]


def reference_forward_f32(x, u, params1, params2):
    """Pure-f32 reference matching the original PyTorch module."""
    xu = jnp.concatenate([x, u], axis=-1).astype(jnp.float32)

    def mlp(p):
        w1, b1, w2, b2, w3, b3 = p
        h1 = jnp.maximum(xu @ w1 + b1, 0.0)
        h2 = jnp.maximum(h1 @ w2 + b2, 0.0)
        return h2 @ w3 + b3

    return mlp(params1), mlp(params2)


def reference_forward_matched(x, u, packed_params):
    """Same math as the kernel (bf16-rounded MXU operands, f32 accumulation)."""
    w1, w2, misc = packed_params
    H = w2.shape[-1]
    f32 = jnp.float32
    xu = jnp.concatenate([x, u], axis=-1).astype(jnp.bfloat16).astype(f32)
    b1, b2, w3, b3 = misc[0:1, :], misc[1:2, :], misc[2:3, :], misc[3:4, 0:2]
    h1 = jnp.maximum(xu @ w1.astype(f32) + b1, 0.0)
    h1a = h1[:, :H].astype(jnp.bfloat16).astype(f32)
    h1b = h1[:, H:].astype(jnp.bfloat16).astype(f32)
    h2a = jnp.maximum(h1a @ w2[0].astype(f32) + b2[:, :H], 0.0)
    h2b = jnp.maximum(h1b @ w2[1].astype(f32) + b2[:, H:], 0.0)
    q1 = jnp.sum(h2a * w3[:, :H], axis=-1, keepdims=True) + b3[:, 0:1]
    q2 = jnp.sum(h2b * w3[:, H:], axis=-1, keepdims=True) + b3[:, 1:2]
    return q1, q2


if __name__ == "__main__":
    key = jax.random.PRNGKey(0)
    k_x, k_u, k_p1, k_p2 = jax.random.split(key, 4)

    batch = 8
    state_dim = 12
    act_dim = 4
    hidden_dim = 256  # hardcoded default in the PyTorch MLP

    x = jax.random.normal(k_x, (batch, state_dim), jnp.float32)
    u = jax.random.normal(k_u, (batch, act_dim), jnp.float32)

    params1 = init_critic_params(k_p1, state_dim + act_dim, hidden_dim, 1)
    params2 = init_critic_params(k_p2, state_dim + act_dim, hidden_dim, 1)
    packed = pack_params(params1, params2)

    q1, q2 = double_critic_forward(x, u, packed)
    q1 = jax.block_until_ready(q1)
    q2 = jax.block_until_ready(q2)

    assert q1.shape == (batch, 1) and q2.shape == (batch, 1)

    # tight check against a reference applying identical bf16 rounding
    m1, m2 = reference_forward_matched(x, u, packed)
    assert jnp.allclose(q1, m1, atol=2e-3, rtol=2e-3)
    assert jnp.allclose(q2, m2, atol=2e-3, rtol=2e-3)

    # loose sanity check against the pure-f32 module semantics
    # (activations/inputs are rounded to bf16 before the MXU -> ~1e-2 rel dev)
    r1, r2 = reference_forward_f32(x, u, params1, params2)
    assert jnp.allclose(q1, r1, atol=5e-2, rtol=5e-2)
    assert jnp.allclose(q2, r2, atol=5e-2, rtol=5e-2)

    print("KERNEL_OK")
</pallas_src>

<mosaic_0001>
module attributes {stable_mosaic.version = 11 : i64} {
  func.func @_double_critic_kernel(%arg0: i32, %arg1: memref<8x16xf32, #tpu.memory_space<vmem>>, %arg2: memref<16x512xbf16, #tpu.memory_space<vmem>>, %arg3: memref<2x256x256xbf16, #tpu.memory_space<vmem>>, %arg4: memref<4x512xf32, #tpu.memory_space<vmem>>, %arg5: memref<8x2xf32, #tpu.memory_space<vmem>>) attributes {dimension_semantics = [#tpu.dimension_semantics<parallel>], iteration_bounds = array<i64: 1>, scalar_prefetch = 0 : i64, scratch_operands = 0 : i64, tpu.core_type = #tpu.core_type<tc>, window_params = [{transform_indices = @transform_0, window_bounds = array<i64: 8, 16>}, {pipeline_mode = #tpu.pipeline_mode<synchronous>, transform_indices = @transform_1, window_bounds = array<i64: 16, 512>}, {pipeline_mode = #tpu.pipeline_mode<synchronous>, transform_indices = @transform_2, window_bounds = array<i64: 2, 256, 256>}, {pipeline_mode = #tpu.pipeline_mode<synchronous>, transform_indices = @transform_3, window_bounds = array<i64: 4, 512>}, {transform_indices = @transform_4, window_bounds = array<i64: 8, 2>}]} {
    %c0 = arith.constant 0 : index
    %c0_0 = arith.constant 0 : index
    %0 = vector.load %arg1[%c0, %c0_0] : memref<8x16xf32, #tpu.memory_space<vmem>>, vector<8x16xf32>
    %1 = arith.truncf %0 : vector<8x16xf32> to vector<8x16xbf16>
    %c0_1 = arith.constant 0 : index
    %c0_2 = arith.constant 0 : index
    %2 = vector.load %arg4[%c0_1, %c0_2] : memref<4x512xf32, #tpu.memory_space<vmem>>, vector<4x512xf32>
    %3 = vector.extract_strided_slice %2 {offsets = [0, 0], sizes = [1, 512], strides = [1, 1]} : vector<4x512xf32> to vector<1x512xf32>
    %4 = vector.extract_strided_slice %2 {offsets = [1, 0], sizes = [1, 512], strides = [1, 1]} : vector<4x512xf32> to vector<1x512xf32>
    %5 = vector.extract_strided_slice %2 {offsets = [2, 0], sizes = [1, 512], strides = [1, 1]} : vector<4x512xf32> to vector<1x512xf32>
    %6 = vector.extract_strided_slice %2 {offsets = [3, 0], sizes = [1, 2], strides = [1, 1]} : vector<4x512xf32> to vector<1x2xf32>
    %c0_3 = arith.constant 0 : index
    %c0_4 = arith.constant 0 : index
    %7 = vector.load %arg2[%c0_3, %c0_4] : memref<16x512xbf16, #tpu.memory_space<vmem>>, vector<16x512xbf16>
    %cst = arith.constant dense<0.000000e+00> : vector<8x512xf32>
    %8 = tpu.matmul %1, %7, %cst {dimension_numbers = #tpu.dot_dimension_numbers<[1], [0], [0], [1], [0, 0, 1, 1], [], []>} : vector<8x16xbf16>, vector<16x512xbf16>, vector<8x512xf32> -> vector<8x512xf32>
    %9 = vector.broadcast %3 : vector<1x512xf32> to vector<8x512xf32>
    %10 = arith.addf %8, %9 : vector<8x512xf32>
    %cst_5 = arith.constant 0.000000e+00 : f32
    %11 = vector.broadcast %cst_5 : f32 to vector<8x512xf32>
    %12 = arith.maximumf %10, %11 : vector<8x512xf32>
    %13 = arith.truncf %12 : vector<8x512xf32> to vector<8x512xbf16>
    %14 = vector.extract_strided_slice %13 {offsets = [0, 0], sizes = [8, 256], strides = [1, 1]} : vector<8x512xbf16> to vector<8x256xbf16>
    %15 = vector.extract_strided_slice %13 {offsets = [0, 256], sizes = [8, 256], strides = [1, 1]} : vector<8x512xbf16> to vector<8x256xbf16>
    %c0_6 = arith.constant 0 : index
    %c0_7 = arith.constant 0 : index
    %c0_8 = arith.constant 0 : index
    %16 = vector.load %arg3[%c0_6, %c0_7, %c0_8] : memref<2x256x256xbf16, #tpu.memory_space<vmem>>, vector<1x256x256xbf16>
    %17 = vector.shape_cast %16 : vector<1x256x256xbf16> to vector<256x256xbf16>
    %cst_9 = arith.constant dense<0.000000e+00> : vector<8x256xf32>
    %18 = tpu.matmul %14, %17, %cst_9 {dimension_numbers = #tpu.dot_dimension_numbers<[1], [0], [0], [1], [0, 0, 1, 1], [], []>} : vector<8x256xbf16>, vector<256x256xbf16>, vector<8x256xf32> -> vector<8x256xf32>
    %19 = vector.extract_strided_slice %4 {offsets = [0, 0], sizes = [1, 256], strides = [1, 1]} : vector<1x512xf32> to vector<1x256xf32>
    %20 = vector.broadcast %19 : vector<1x256xf32> to vector<8x256xf32>
    %21 = arith.addf %18, %20 : vector<8x256xf32>
    %cst_10 = arith.constant 0.000000e+00 : f32
    %22 = vector.broadcast %cst_10 : f32 to vector<8x256xf32>
    %23 = arith.maximumf %21, %22 : vector<8x256xf32>
    %c1 = arith.constant 1 : index
    %c0_11 = arith.constant 0 : index
    %c0_12 = arith.constant 0 : index
    %24 = vector.load %arg3[%c1, %c0_11, %c0_12] : memref<2x256x256xbf16, #tpu.memory_space<vmem>>, vector<1x256x256xbf16>
    %25 = vector.shape_cast %24 : vector<1x256x256xbf16> to vector<256x256xbf16>
    %cst_13 = arith.constant dense<0.000000e+00> : vector<8x256xf32>
    %26 = tpu.matmul %15, %25, %cst_13 {dimension_numbers = #tpu.dot_dimension_numbers<[1], [0], [0], [1], [0, 0, 1, 1], [], []>} : vector<8x256xbf16>, vector<256x256xbf16>, vector<8x256xf32> -> vector<8x256xf32>
    %27 = vector.extract_strided_slice %4 {offsets = [0, 256], sizes = [1, 256], strides = [1, 1]} : vector<1x512xf32> to vector<1x256xf32>
    %28 = vector.broadcast %27 : vector<1x256xf32> to vector<8x256xf32>
    %29 = arith.addf %26, %28 : vector<8x256xf32>
    %cst_14 = arith.constant 0.000000e+00 : f32
    %30 = vector.broadcast %cst_14 : f32 to vector<8x256xf32>
    %31 = arith.maximumf %29, %30 : vector<8x256xf32>
    %32 = vector.extract_strided_slice %5 {offsets = [0, 0], sizes = [1, 256], strides = [1, 1]} : vector<1x512xf32> to vector<1x256xf32>
    %33 = vector.broadcast %32 : vector<1x256xf32> to vector<8x256xf32>
    %34 = arith.mulf %23, %33 : vector<8x256xf32>
    %cst_15 = arith.constant dense<0.000000e+00> : vector<8xf32>
    %35 = vector.multi_reduction <add>, %34, %cst_15 [1] : vector<8x256xf32> to vector<8xf32>
    %36 = vector.shape_cast %35 : vector<8xf32> to vector<8x1xf32>
    %37 = vector.extract_strided_slice %5 {offsets = [0, 256], sizes = [1, 256], strides = [1, 1]} : vector<1x512xf32> to vector<1x256xf32>
    %38 = vector.broadcast %37 : vector<1x256xf32> to vector<8x256xf32>
    %39 = arith.mulf %31, %38 : vector<8x256xf32>
    %cst_16 = arith.constant dense<0.000000e+00> : vector<8xf32>
    %40 = vector.multi_reduction <add>, %39, %cst_16 [1] : vector<8x256xf32> to vector<8xf32>
    %41 = vector.shape_cast %40 : vector<8xf32> to vector<8x1xf32>
    %42 = tpu.concatenate %36, %41 in 1 : vector<8x1xf32>, vector<8x1xf32> -> vector<8x2xf32>
    %43 = vector.broadcast %6 : vector<1x2xf32> to vector<8x2xf32>
    %44 = arith.addf %42, %43 : vector<8x2xf32>
    %c0_17 = arith.constant 0 : index
    %c0_18 = arith.constant 0 : index
    %45 = vector.load %arg5[%c0_17, %c0_18] : memref<8x2xf32, #tpu.memory_space<vmem>>, vector<8x2xf32>
    tpu.vector_store %arg5[%c0_17, %c0_18], %44 {strides = array<i32>} : memref<8x2xf32, #tpu.memory_space<vmem>>, vector<8x2xf32>,
    return
  }
  func.func @transform_0(%arg0: i32) -> (i32, i32) {
    %c0_i32 = arith.constant 0 : i32
    %c0_i32_0 = arith.constant 0 : i32
    return %arg0, %c0_i32 : i32, i32
  }
  func.func @transform_1(%arg0: i32) -> (i32, i32) {
    %c0_i32 = arith.constant 0 : i32
    %c0_i32_0 = arith.constant 0 : i32
    %c0_i32_1 = arith.constant 0 : i32
    return %c0_i32, %c0_i32_0 : i32, i32
  }
  func.func @transform_2(%arg0: i32) -> (i32, i32, i32) {
    %c0_i32 = arith.constant 0 : i32
    %c0_i32_0 = arith.constant 0 : i32
    %c0_i32_1 = arith.constant 0 : i32
    %c0_i32_2 = arith.constant 0 : i32
    return %c0_i32, %c0_i32_0, %c0_i32_1 : i32, i32, i32
  }
  func.func @transform_3(%arg0: i32) -> (i32, i32) {
    %c0_i32 = arith.constant 0 : i32
    %c0_i32_0 = arith.constant 0 : i32
    %c0_i32_1 = arith.constant 0 : i32
    return %c0_i32, %c0_i32_0 : i32, i32
  }
  func.func @transform_4(%arg0: i32) -> (i32, i32) {
    %c0_i32 = arith.constant 0 : i32
    %c0_i32_0 = arith.constant 0 : i32
    return %arg0, %c0_i32 : i32, i32
  }
}

</mosaic_0001>

<llo_original>
// kernel: tpu_custom_call.1
$region0: #{tpu_custom_call.1}
  #allocation0 [shape = 'u32[]', space=smem, size = 0x4, offset = 0x4, fixed_abs, tag = 'smem constant byte address 0x4 - core index']
  #allocation1 [shape = 'u32[144,128]{1,0:T(1,128)}', space=vmem, size = 0x12000, scoped, tag = 'internal scratch']
  %s0 = inlined_call_operand.hbm [shape: f32[8,16], index: 0, kind: input, shape index: {}]
  %s1 = inlined_call_operand.hbm [shape: bf16[16,512], index: 1, kind: input, shape index: {}]
  %s2 = inlined_call_operand.hbm [shape: bf16[2,256,256], index: 2, kind: input, shape index: {}]
  %s3 = inlined_call_operand.hbm [shape: f32[4,512], index: 3, kind: input, shape index: {}]
  %s4 = inlined_call_operand.vmem [shape: f32[8,2], index: 4, kind: output, shape index: {}]
  %s5 = sld [smem:[#allocation0]]
  $region42: #{tpu_custom_call.1} parent=0
    _
  %s7 = ssub.s32 1, %s5
  %s8 = scalar_select 0, %s7, %s5
  $region1: #{tpu_custom_call.1} parent=0
    #allocation2 [shape = 'u8[4096]{0}', space=vmem, size = 0x1000, scoped, tag = 'input window, operand 0, single buffered']
    #allocation3 [shape = 's32[1]{0}', space=sflag, size = 0x4, scoped, tag = 'scoped memory for tpu_custom_call.1']
    #allocation4 [shape = 'u8[16384]{0}', space=vmem, size = 0x4000, scoped, tag = 'input window, operand 1, single buffered']
    #allocation5 [shape = 's32[1]{0}', space=sflag, size = 0x4, scoped, tag = 'scoped memory for tpu_custom_call.1']
    #allocation6 [shape = 'u8[262144]{0}', space=vmem, size = 0x40000, scoped, tag = 'input window, operand 2, single buffered']
    #allocation7 [shape = 'u8[8192]{0}', space=vmem, size = 0x2000, scoped, tag = 'input window, operand 3, single buffered']
    #allocation8 [shape = 's32[1]{0}', space=sflag, size = 0x4, scoped, tag = 'scoped memory for tpu_custom_call.1']
    %9 = vsyncpa [#allocation3], 0
    %10 = vsyncpa [#allocation5], 0
    %11 = vsyncpa [#allocation8], 0
    // Predicated region
    $region2: #{tpu_custom_call.1} parent=1 // pred_check
      _
    $region3: #{tpu_custom_call.1} parent=1 // pred_check_branch
      %13 = sbr.rel (0) target = $region5
    $region4: #{tpu_custom_call.1} parent=1 // pred_region
      %s15 = ssub.s32 128, 128
      %16 = vsyncadd [#allocation3], %s15
      %s18 = sshll.u32 [#allocation2], 4
      %s19 = int_to_ptr.vmem [resolvable:$true] %s18
      %21 = dma.hbm_to_vmem [thread:$0]  %s0, 128, %s19, [#allocation3]
    $region5: #{tpu_custom_call.1} parent=1 // pred_fallthru
      _
    // Predicated region
    $region6: #{tpu_custom_call.1} parent=1 // pred_check
      _
    $region7: #{tpu_custom_call.1} parent=1 // pred_check_branch
      %23 = sbr.rel (0) target = $region9
    $region8: #{tpu_custom_call.1} parent=1 // pred_region
      %s25 = ssub.s32 512, 512
      %26 = vsyncadd [#allocation5], %s25
      %s27 = sshll.u32 [#allocation4], 4
      %s28 = int_to_ptr.vmem [resolvable:$true] %s27
      %33 = dma.hbm_to_vmem [thread:$0]  %s1, 512, %s28, [#allocation5], 256, 256, 16
    $region9: #{tpu_custom_call.1} parent=1 // pred_fallthru
      _
    // Predicated region
    $region10: #{tpu_custom_call.1} parent=1 // pred_check
      _
    $region11: #{tpu_custom_call.1} parent=1 // pred_check_branch
      %35 = sbr.rel (0) target = $region13
    $region12: #{tpu_custom_call.1} parent=1 // pred_region
      %s37 = ssub.s32 8192, 8192
      %38 = vsyncadd [#allocation5], %s37
      %s39 = sshll.u32 [#allocation6], 4
      %s40 = int_to_ptr.vmem [resolvable:$true] %s39
      %45 = dma.hbm_to_vmem [thread:$0]  %s2, 8192, %s40, [#allocation5], 128, 128, 8
    $region13: #{tpu_custom_call.1} parent=1 // pred_fallthru
      _
    // Predicated region
    $region14: #{tpu_custom_call.1} parent=1 // pred_check
      _
    $region15: #{tpu_custom_call.1} parent=1 // pred_check_branch
      %47 = sbr.rel (0) target = $region17
    $region16: #{tpu_custom_call.1} parent=1 // pred_region
      %s49 = ssub.s32 256, 256
      %50 = vsyncadd [#allocation8], %s49
      %s52 = sshll.u32 [#allocation7], 4
      %s53 = int_to_ptr.vmem [resolvable:$true] %s52
      %55 = dma.hbm_to_vmem [thread:$0]  %s3, 256, %s53, [#allocation8]
    $region17: #{tpu_custom_call.1} parent=1 // pred_fallthru
      _
    // Predicated region
    $region18: #{tpu_custom_call.1} parent=1 // pred_check
      _
    $region19: #{tpu_custom_call.1} parent=1 // pred_check_branch
      %57 = sbr.rel (0) target = $region21
    $region20: #{tpu_custom_call.1} parent=1 // pred_region
      %58 = dma.done [#allocation3], 128
    $region21: #{tpu_custom_call.1} parent=1 // pred_fallthru
      _
    // Predicated region
    $region22: #{tpu_custom_call.1} parent=1 // pred_check
      _
    $region23: #{tpu_custom_call.1} parent=1 // pred_check_branch
      %60 = sbr.rel (0) target = $region25
    $region24: #{tpu_custom_call.1} parent=1 // pred_region
      %61 = dma.done [#allocation5], 512
    $region25: #{tpu_custom_call.1} parent=1 // pred_fallthru
      _
    // Predicated region
    $region26: #{tpu_custom_call.1} parent=1 // pred_check
      _
    $region27: #{tpu_custom_call.1} parent=1 // pred_check_branch
      %63 = sbr.rel (0) target = $region29
    $region28: #{tpu_custom_call.1} parent=1 // pred_region
      %64 = dma.done [#allocation5], 8192
    $region29: #{tpu_custom_call.1} parent=1 // pred_fallthru
      _
    // Predicated region
    $region30: #{tpu_custom_call.1} parent=1 // pred_check
      _
    $region31: #{tpu_custom_call.1} parent=1 // pred_check_branch
      %66 = sbr.rel (0) target = $region33
    $region32: #{tpu_custom_call.1} parent=1 // pred_region
      %67 = dma.done [#allocation8], 256
    $region33: #{tpu_custom_call.1} parent=1 // pred_fallthru
      _
    %v69 = vld [vmem:[#allocation2] sm:$0xff]
    %v70 = vpack.c.bf16 %v69, %v69
    %v71 = vld [vmem:[#allocation7] sm:$0xff]
    %v72 = vld [vmem:[#allocation7 + $0x8] sm:$0xff]
    %v73 = vld [vmem:[#allocation4] sm:$0xff]
    %v74 = vld [vmem:[#allocation4 + $0x8] sm:$0xff]
    %v75 = vld [vmem:[#allocation4 + $0x10] sm:$0xff]
    %v76 = vld [vmem:[#allocation4 + $0x18] sm:$0xff]
    %v79 = vlaneseq
    %v80 = vshrl.u32 %v79, 7
    %v81 = vsub.s32 0, %v80
    %v82 = vrot.slane %v71, %v81
    %v83 = vlaneseq
    %v84 = vshrl.u32 %v83, 7
    %v85 = vsub.s32 4, %v84
    %v86 = vrot.slane %v71, %v85
    %v87 = vlaneseq
    %v88 = vshrl.u32 %v87, 7
    %v89 = vsub.s32 0, %v88
    %v90 = vrot.slane %v72, %v89
    %v91 = vlaneseq
    %v92 = vshrl.u32 %v91, 7
    %v93 = vsub.s32 4, %v92
    %v94 = vrot.slane %v72, %v93
    %v99 = vlaneseq
    %v100 = vshrl.u32 %v99, 7
    %v101 = vsub.s32 0, %v100
    %v102 = vrot.slane %v82, %v101
    %v103 = vlaneseq
    %v104 = vshrl.u32 %v103, 7
    %v105 = vsub.s32 0, %v104
    %v106 = vrot.slane %v86, %v105
    %v107 = vlaneseq
    %v108 = vshrl.u32 %v107, 7
    %v109 = vsub.s32 0, %v108
    %v110 = vrot.slane %v90, %v109
    %v111 = vlaneseq
    %v112 = vshrl.u32 %v111, 7
    %v113 = vsub.s32 0, %v112
    %v114 = vrot.slane %v94, %v113
    %v119 = vunpack.c.l.b16 %v73
    %v120 = vunpack.c.h.b16 %v73
    %v121 = vunpack.c.l.b16 %v74
    %v122 = vunpack.c.h.b16 %v74
    %v123 = vunpack.c.l.b16 %v75
    %v124 = vunpack.c.h.b16 %v75
    %v125 = vunpack.c.l.b16 %v76
    %v126 = vunpack.c.h.b16 %v76
    %v127 = vpack.c.b16 %v123, %v119
    %v128 = vpack.c.b16 %v124, %v120
    %v129 = vpack.c.b16 %v125, %v121
    %v130 = vpack.c.b16 %v126, %v122
    %vm135 = vcmask 130048
    %v137 = vsel %vm135, %v70, 0
    %139 = vmatprep.subr.bf16.mxu0 %v128
    %140 = vmatpush1.bf16.msra.mxu0 %v127
    %141 = vmatprep.subr.bf16.mxu0 0
    %142 = vmatpush1.bf16.msra.mxu0 0
    %143 = vmatprep.subr.bf16.mxu0 0
    %144 = vmatpush1.bf16.msra.mxu0 0
    %145 = vmatprep.subr.bf16.mxu0 0
    %146 = vmatpush1.bf16.msra.mxu0 0
    %147 = vmatprep.subr.bf16.mxu0 0
    %148 = vmatpush1.bf16.msra.mxu0 0
    %149 = vmatprep.subr.bf16.mxu0 0
    %150 = vmatpush1.bf16.msra.mxu0 0
    %151 = vmatprep.subr.bf16.mxu0 0
    %152 = vmatpush1.bf16.msra.mxu0 0
    %153 = vmatprep.subr.bf16.mxu0 0
    %154 = vmatpush1.bf16.msra.mxu0 0
    %155 = vmatprep.subr.bf16.mxu0 0
    %156 = vmatpush1.bf16.msra.mxu0 0
    %157 = vmatprep.subr.bf16.mxu0 0
    %158 = vmatpush1.bf16.msra.mxu0 0
    %159 = vmatprep.subr.bf16.mxu0 0
    %160 = vmatpush1.bf16.msra.mxu0 0
    %161 = vmatprep.subr.bf16.mxu0 0
    %162 = vmatpush1.bf16.msra.mxu0 0
    %163 = vmatprep.subr.bf16.mxu0 0
    %164 = vmatpush1.bf16.msra.mxu0 0
    %165 = vmatprep.subr.bf16.mxu0 0
    %166 = vmatpush1.bf16.msra.mxu0 0
    %167 = vmatprep.subr.bf16.mxu0 0
    %168 = vmatpush1.bf16.msra.mxu0 0
    %169 = vmatprep.subr.bf16.mxu0 0
    %170 = vmatpush1.bf16.msra.mxu0 0
    %171 = vmatprep.mubr.bf16.mxu0 0
    %172 = vmatmul.mubr.bf16.gmra.mrb[0].mxu0 %v137
    %v173 = vpop.f32.mrb[0].mxu0
    %v174 = vadd.f32 %v102, %v173
    %v175 = vpop.f32.mrb[0].mxu0
    %v176 = vadd.f32 %v106, %v175
    %v177 = vpop.f32.mrb[0].mxu0
    %v178 = vpop.f32.mrb[0].mxu0
    %179 = vdwg.mxu0
    %180 = vmatprep.subr.bf16.mxu0 %v130
    %181 = vmatpush1.bf16.msra.mxu0 %v129
    %182 = vmatprep.subr.bf16.mxu0 0
    %183 = vmatpush1.bf16.msra.mxu0 0
    %184 = vmatprep.subr.bf16.mxu0 0
    %185 = vmatpush1.bf16.msra.mxu0 0
    %186 = vmatprep.subr.bf16.mxu0 0
    %187 = vmatpush1.bf16.msra.mxu0 0
    %188 = vmatprep.subr.bf16.mxu0 0
    %189 = vmatpush1.bf16.msra.mxu0 0
    %190 = vmatprep.subr.bf16.mxu0 0
    %191 = vmatpush1.bf16.msra.mxu0 0
    %192 = vmatprep.subr.bf16.mxu0 0
    %193 = vmatpush1.bf16.msra.mxu0 0
    %194 = vmatprep.subr.bf16.mxu0 0
    %195 = vmatpush1.bf16.msra.mxu0 0
    %196 = vmatprep.subr.bf16.mxu0 0
    %197 = vmatpush1.bf16.msra.mxu0 0
    %198 = vmatprep.subr.bf16.mxu0 0
    %199 = vmatpush1.bf16.msra.mxu0 0
    %200 = vmatprep.subr.bf16.mxu0 0
    %201 = vmatpush1.bf16.msra.mxu0 0
    %202 = vmatprep.subr.bf16.mxu0 0
    %203 = vmatpush1.bf16.msra.mxu0 0
    %204 = vmatprep.subr.bf16.mxu0 0
    %205 = vmatpush1.bf16.msra.mxu0 0
    %206 = vmatprep.subr.bf16.mxu0 0
    %207 = vmatpush1.bf16.msra.mxu0 0
    %208 = vmatprep.subr.bf16.mxu0 0
    %209 = vmatpush1.bf16.msra.mxu0 0
    %210 = vmatprep.subr.bf16.mxu0 0
    %211 = vmatpush1.bf16.msra.mxu0 0
    %212 = vmatprep.mubr.bf16.mxu0 0
    %213 = vmatmul.mubr.bf16.gmra.mrb[0].mxu0 %v137
    %v214 = vpop.f32.mrb[0].mxu0
    %v215 = vadd.f32 %v110, %v214
    %v216 = vpop.f32.mrb[0].mxu0
    %v217 = vadd.f32 %v114, %v216
    %v218 = vpop.f32.mrb[0].mxu0
    %v219 = vpop.f32.mrb[0].mxu0
    %220 = vdwg.mxu0
    %v221 = vmax.f32 %v174, 0.0
    %v222 = vmax.f32 %v176, 0.0
    %v223 = vmax.f32 %v215, 0.0
    %v224 = vmax.f32 %v217, 0.0
    %v225 = vpack.c.bf16 %v221, %v221
    %v226 = vpack.c.bf16 %v222, %v222
    %v227 = vpack.c.bf16 %v223, %v223
    %v228 = vpack.c.bf16 %v224, %v224
    %v229 = vld [vmem:[#allocation6] sm:$0xff]
    %v230 = vld [vmem:[#allocation6 + $0x8] sm:$0xff]
    %v231 = vld [vmem:[#allocation6 + $0x10] sm:$0xff]
    %v232 = vld [vmem:[#allocation6 + $0x18] sm:$0xff]
    %v233 = vld [vmem:[#allocation6 + $0x20] sm:$0xff]
    %v234 = vld [vmem:[#allocation6 + $0x28] sm:$0xff]
    %v235 = vld [vmem:[#allocation6 + $0x30] sm:$0xff]
    %v236 = vld [vmem:[#allocation6 + $0x38] sm:$0xff]
    %v237 = vld [vmem:[#allocation6 + $0x40] sm:$0xff]
    %v238 = vld [vmem:[#allocation6 + $0x48] sm:$0xff]
    %v239 = vld [vmem:[#allocation6 + $0x50] sm:$0xff]
    %v240 = vld [vmem:[#allocation6 + $0x58] sm:$0xff]
    %v241 = vld [vmem:[#allocation6 + $0x60] sm:$0xff]
    %v242 = vld [vmem:[#allocation6 + $0x68] sm:$0xff]
    %v243 = vld [vmem:[#allocation6 + $0x70] sm:$0xff]
    %v244 = vld [vmem:[#allocation6 + $0x78] sm:$0xff]
    %v245 = vld [vmem:[#allocation6 + $0x80] sm:$0xff]
    %v246 = vld [vmem:[#allocation6 + $0x88] sm:$0xff]
    %v247 = vld [vmem:[#allocation6 + $0x90] sm:$0xff]
    %v248 = vld [vmem:[#allocation6 + $0x98] sm:$0xff]
    %v249 = vld [vmem:[#allocation6 + $0xa0] sm:$0xff]
    %v250 = vld [vmem:[#allocation6 + $0xa8] sm:$0xff]
    %v251 = vld [vmem:[#allocation6 + $0xb0] sm:$0xff]
    %v252 = vld [vmem:[#allocation6 + $0xb8] sm:$0xff]
    %v253 = vld [vmem:[#allocation6 + $0xc0] sm:$0xff]
    %v254 = vld [vmem:[#allocation6 + $0xc8] sm:$0xff]
    %v255 = vld [vmem:[#allocation6 + $0xd0] sm:$0xff]
    %v256 = vld [vmem:[#allocation6 + $0xd8] sm:$0xff]
    %v257 = vld [vmem:[#allocation6 + $0xe0] sm:$0xff]
    %v258 = vld [vmem:[#allocation6 + $0xe8] sm:$0xff]
    %v259 = vld [vmem:[#allocation6 + $0xf0] sm:$0xff]
    %v260 = vld [vmem:[#allocation6 + $0xf8] sm:$0xff]
    %v261 = vlaneseq
    %v262 = vshrl.u32 %v261, 7
    %v263 = vsub.s32 1, %v262
    %v264 = vrot.slane %v71, %v263
    %v265 = vlaneseq
    %v266 = vshrl.u32 %v265, 7
    %v267 = vsub.s32 5, %v266
    %v268 = vrot.slane %v71, %v267
    %v271 = vlaneseq
    %v272 = vshrl.u32 %v271, 7
    %v273 = vsub.s32 1, %v272
    %v274 = vrot.slane %v264, %v273
    %v275 = vlaneseq
    %v276 = vshrl.u32 %v275, 7
    %v277 = vsub.s32 1, %v276
    %v278 = vrot.slane %v268, %v277
    %v311 = vunpack.c.l.b16 %v229
    %v312 = vunpack.c.h.b16 %v229
    %v313 = vunpack.c.l.b16 %v230
    %v314 = vunpack.c.h.b16 %v230
    %v315 = vunpack.c.l.b16 %v231
    %v316 = vunpack.c.h.b16 %v231
    %v317 = vunpack.c.l.b16 %v232
    %v318 = vunpack.c.h.b16 %v232
    %v319 = vunpack.c.l.b16 %v233
    %v320 = vunpack.c.h.b16 %v233
    %v321 = vunpack.c.l.b16 %v234
    %v322 = vunpack.c.h.b16 %v234
    %v323 = vunpack.c.l.b16 %v235
    %v324 = vunpack.c.h.b16 %v235
    %v325 = vunpack.c.l.b16 %v236
    %v326 = vunpack.c.h.b16 %v236
    %v327 = vunpack.c.l.b16 %v237
    %v328 = vunpack.c.h.b16 %v237
    %v329 = vunpack.c.l.b16 %v238
    %v330 = vunpack.c.h.b16 %v238
    %v331 = vunpack.c.l.b16 %v239
    %v332 = vunpack.c.h.b16 %v239
    %v333 = vunpack.c.l.b16 %v240
    %v334 = vunpack.c.h.b16 %v240
    %v335 = vunpack.c.l.b16 %v241
    %v336 = vunpack.c.h.b16 %v241
    %v337 = vunpack.c.l.b16 %v242
    %v338 = vunpack.c.h.b16 %v242
    %v339 = vunpack.c.l.b16 %v243
    %v340 = vunpack.c.h.b16 %v243
    %v341 = vunpack.c.l.b16 %v244
    %v342 = vunpack.c.h.b16 %v244
    %v343 = vunpack.c.l.b16 %v245
    %v344 = vunpack.c.h.b16 %v245
    %v345 = vunpack.c.l.b16 %v246
    %v346 = vunpack.c.h.b16 %v246
    %v347 = vunpack.c.l.b16 %v247
    %v348 = vunpack.c.h.b16 %v247
    %v349 = vunpack.c.l.b16 %v248
    %v350 = vunpack.c.h.b16 %v248
    %v351 = vunpack.c.l.b16 %v249
    %v352 = vunpack.c.h.b16 %v249
    %v353 = vunpack.c.l.b16 %v250
    %v354 = vunpack.c.h.b16 %v250
    %v355 = vunpack.c.l.b16 %v251
    %v356 = vunpack.c.h.b16 %v251
    %v357 = vunpack.c.l.b16 %v252
    %v358 = vunpack.c.h.b16 %v252
    %v359 = vunpack.c.l.b16 %v253
    %v360 = vunpack.c.h.b16 %v253
    %v361 = vunpack.c.l.b16 %v254
    %v362 = vunpack.c.h.b16 %v254
    %v363 = vunpack.c.l.b16 %v255
    %v364 = vunpack.c.h.b16 %v255
    %v365 = vunpack.c.l.b16 %v256
    %v366 = vunpack.c.h.b16 %v256
    %v367 = vunpack.c.l.b16 %v257
    %v368 = vunpack.c.h.b16 %v257
    %v369 = vunpack.c.l.b16 %v258
    %v370 = vunpack.c.h.b16 %v258
    %v371 = vunpack.c.l.b16 %v259
    %v372 = vunpack.c.h.b16 %v259
    %v373 = vunpack.c.l.b16 %v260
    %v374 = vunpack.c.h.b16 %v260
    %v375 = vpack.c.b16 %v313, %v311
    %v376 = vpack.c.b16 %v314, %v312
    %v377 = vpack.c.b16 %v317, %v315
    %v378 = vpack.c.b16 %v318, %v316
    %v379 = vpack.c.b16 %v321, %v319
    %v380 = vpack.c.b16 %v322, %v320
    %v381 = vpack.c.b16 %v325, %v323
    %v382 = vpack.c.b16 %v326, %v324
    %v383 = vpack.c.b16 %v329, %v327
    %v384 = vpack.c.b16 %v330, %v328
    %v385 = vpack.c.b16 %v333, %v331
    %v386 = vpack.c.b16 %v334, %v332
    %v387 = vpack.c.b16 %v337, %v335
    %v388 = vpack.c.b16 %v338, %v336
    %v389 = vpack.c.b16 %v341, %v339
    %v390 = vpack.c.b16 %v342, %v340
    %v391 = vpack.c.b16 %v345, %v343
    %v392 = vpack.c.b16 %v346, %v344
    %v393 = vpack.c.b16 %v349, %v347
    %v394 = vpack.c.b16 %v350, %v348
    %v395 = vpack.c.b16 %v353, %v351
    %v396 = vpack.c.b16 %v354, %v352
    %v397 = vpack.c.b16 %v357, %v355
    %v398 = vpack.c.b16 %v358, %v356
    %v399 = vpack.c.b16 %v361, %v359
    %v400 = vpack.c.b16 %v362, %v360
    %v401 = vpack.c.b16 %v365, %v363
    %v402 = vpack.c.b16 %v366, %v364
    %v403 = vpack.c.b16 %v369, %v367
    %v404 = vpack.c.b16 %v370, %v368
    %v405 = vpack.c.b16 %v373, %v371
    %v406 = vpack.c.b16 %v374, %v372
    %439 = vmatprep.subr.bf16.mxu0 %v376
    %440 = vmatpush1.bf16.msra.mxu0 %v375
    %441 = vmatprep.subr.bf16.mxu0 %v378
    %442 = vmatpush1.bf16.msra.mxu0 %v377
    %443 = vmatprep.subr.bf16.mxu0 %v380
    %444 = vmatpush1.bf16.msra.mxu0 %v379
    %445 = vmatprep.subr.bf16.mxu0 %v382
    %446 = vmatpush1.bf16.msra.mxu0 %v381
    %447 = vmatprep.subr.bf16.mxu0 %v384
    %448 = vmatpush1.bf16.msra.mxu0 %v383
    %449 = vmatprep.subr.bf16.mxu0 %v386
    %450 = vmatpush1.bf16.msra.mxu0 %v385
    %451 = vmatprep.subr.bf16.mxu0 %v388
    %452 = vmatpush1.bf16.msra.mxu0 %v387
    %453 = vmatprep.subr.bf16.mxu0 %v390
    %454 = vmatpush1.bf16.msra.mxu0 %v389
    %455 = vmatprep.subr.bf16.mxu0 %v392
    %456 = vmatpush1.bf16.msra.mxu0 %v391
    %457 = vmatprep.subr.bf16.mxu0 %v394
    %458 = vmatpush1.bf16.msra.mxu0 %v393
    %459 = vmatprep.subr.bf16.mxu0 %v396
    %460 = vmatpush1.bf16.msra.mxu0 %v395
    %461 = vmatprep.subr.bf16.mxu0 %v398
    %462 = vmatpush1.bf16.msra.mxu0 %v397
    %463 = vmatprep.subr.bf16.mxu0 %v400
    %464 = vmatpush1.bf16.msra.mxu0 %v399
    %465 = vmatprep.subr.bf16.mxu0 %v402
    %466 = vmatpush1.bf16.msra.mxu0 %v401
    %467 = vmatprep.subr.bf16.mxu0 %v404
    %468 = vmatpush1.bf16.msra.mxu0 %v403
    %469 = vmatprep.subr.bf16.mxu0 %v406
    %470 = vmatpush1.bf16.msra.mxu0 %v405
    %471 = vmatprep.mubr.bf16.mxu0 %v226
    %472 = vmatmul.mubr.bf16.gmra.mrb[0].mxu0 %v225
    %v473 = vpop.f32.mrb[0].mxu0
    %v474 = vadd.f32 %v274, %v473
    %v475 = vpop.f32.mrb[0].mxu0
    %v476 = vadd.f32 %v278, %v475
    %v477 = vpop.f32.mrb[0].mxu0
    %v478 = vpop.f32.mrb[0].mxu0
    %479 = vdwg.mxu0
    %v480 = vmax.f32 %v474, 0.0
    %v481 = vmax.f32 %v476, 0.0
    %s482 = scalar_lea.vmem [#allocation6], 256
    %v483 = vld [vmem:[%s482] sm:$0xff]
    %v484 = vld [vmem:[%s482 + $0x8] sm:$0xff]
    %v485 = vld [vmem:[%s482 + $0x10] sm:$0xff]
    %v486 = vld [vmem:[%s482 + $0x18] sm:$0xff]
    %v487 = vld [vmem:[%s482 + $0x20] sm:$0xff]
    %v488 = vld [vmem:[%s482 + $0x28] sm:$0xff]
    %v489 = vld [vmem:[%s482 + $0x30] sm:$0xff]
    %v490 = vld [vmem:[%s482 + $0x38] sm:$0xff]
    %v491 = vld [vmem:[%s482 + $0x40] sm:$0xff]
    %v492 = vld [vmem:[%s482 + $0x48] sm:$0xff]
    %v493 = vld [vmem:[%s482 + $0x50] sm:$0xff]
    %v494 = vld [vmem:[%s482 + $0x58] sm:$0xff]
    %v495 = vld [vmem:[%s482 + $0x60] sm:$0xff]
    %v496 = vld [vmem:[%s482 + $0x68] sm:$0xff]
    %v497 = vld [vmem:[%s482 + $0x70] sm:$0xff]
    %v498 = vld [vmem:[%s482 + $0x78] sm:$0xff]
    %v499 = vld [vmem:[%s482 + $0x80] sm:$0xff]
    %v500 = vld [vmem:[%s482 + $0x88] sm:$0xff]
    %v501 = vld [vmem:[%s482 + $0x90] sm:$0xff]
    %v502 = vld [vmem:[%s482 + $0x98] sm:$0xff]
    %v503 = vld [vmem:[%s482 + $0xa0] sm:$0xff]
    %v504 = vld [vmem:[%s482 + $0xa8] sm:$0xff]
    %v505 = vld [vmem:[%s482 + $0xb0] sm:$0xff]
    %v506 = vld [vmem:[%s482 + $0xb8] sm:$0xff]
    %v507 = vld [vmem:[%s482 + $0xc0] sm:$0xff]
    %v508 = vld [vmem:[%s482 + $0xc8] sm:$0xff]
    %v509 = vld [vmem:[%s482 + $0xd0] sm:$0xff]
    %v510 = vld [vmem:[%s482 + $0xd8] sm:$0xff]
    %v511 = vld [vmem:[%s482 + $0xe0] sm:$0xff]
    %v512 = vld [vmem:[%s482 + $0xe8] sm:$0xff]
    %v513 = vld [vmem:[%s482 + $0xf0] sm:$0xff]
    %v514 = vld [vmem:[%s482 + $0xf8] sm:$0xff]
    %v515 = vlaneseq
    %v516 = vshrl.u32 %v515, 7
    %v517 = vsub.s32 1, %v516
    %v518 = vrot.slane %v72, %v517
    %v519 = vlaneseq
    %v520 = vshrl.u32 %v519, 7
    %v521 = vsub.s32 5, %v520
    %v522 = vrot.slane %v72, %v521
    %v525 = vlaneseq
    %v526 = vshrl.u32 %v525, 7
    %v527 = vsub.s32 1, %v526
    %v528 = vrot.slane %v518, %v527
    %v529 = vlaneseq
    %v530 = vshrl.u32 %v529, 7
    %v531 = vsub.s32 1, %v530
    %v532 = vrot.slane %v522, %v531
    %v565 = vunpack.c.l.b16 %v483
    %v566 = vunpack.c.h.b16 %v483
    %v567 = vunpack.c.l.b16 %v484
    %v568 = vunpack.c.h.b16 %v484
    %v569 = vunpack.c.l.b16 %v485
    %v570 = vunpack.c.h.b16 %v485
    %v571 = vunpack.c.l.b16 %v486
    %v572 = vunpack.c.h.b16 %v486
    %v573 = vunpack.c.l.b16 %v487
    %v574 = vunpack.c.h.b16 %v487
    %v575 = vunpack.c.l.b16 %v488
    %v576 = vunpack.c.h.b16 %v488
    %v577 = vunpack.c.l.b16 %v489
    %v578 = vunpack.c.h.b16 %v489
    %v579 = vunpack.c.l.b16 %v490
    %v580 = vunpack.c.h.b16 %v490
    %v581 = vunpack.c.l.b16 %v491
    %v582 = vunpack.c.h.b16 %v491
    %v583 = vunpack.c.l.b16 %v492
    %v584 = vunpack.c.h.b16 %v492
    %v585 = vunpack.c.l.b16 %v493
    %v586 = vunpack.c.h.b16 %v493
    %v587 = vunpack.c.l.b16 %v494
    %v588 = vunpack.c.h.b16 %v494
    %v589 = vunpack.c.l.b16 %v495
    %v590 = vunpack.c.h.b16 %v495
    %v591 = vunpack.c.l.b16 %v496
    %v592 = vunpack.c.h.b16 %v496
    %v593 = vunpack.c.l.b16 %v497
    %v594 = vunpack.c.h.b16 %v497
    %v595 = vunpack.c.l.b16 %v498
    %v596 = vunpack.c.h.b16 %v498
    %v597 = vunpack.c.l.b16 %v499
    %v598 = vunpack.c.h.b16 %v499
    %v599 = vunpack.c.l.b16 %v500
    %v600 = vunpack.c.h.b16 %v500
    %v601 = vunpack.c.l.b16 %v501
    %v602 = vunpack.c.h.b16 %v501
    %v603 = vunpack.c.l.b16 %v502
    %v604 = vunpack.c.h.b16 %v502
    %v605 = vunpack.c.l.b16 %v503
    %v606 = vunpack.c.h.b16 %v503
    %v607 = vunpack.c.l.b16 %v504
    %v608 = vunpack.c.h.b16 %v504
    %v609 = vunpack.c.l.b16 %v505
    %v610 = vunpack.c.h.b16 %v505
    %v611 = vunpack.c.l.b16 %v506
    %v612 = vunpack.c.h.b16 %v506
    %v613 = vunpack.c.l.b16 %v507
    %v614 = vunpack.c.h.b16 %v507
    %v615 = vunpack.c.l.b16 %v508
    %v616 = vunpack.c.h.b16 %v508
    %v617 = vunpack.c.l.b16 %v509
    %v618 = vunpack.c.h.b16 %v509
    %v619 = vunpack.c.l.b16 %v510
    %v620 = vunpack.c.h.b16 %v510
    %v621 = vunpack.c.l.b16 %v511
    %v622 = vunpack.c.h.b16 %v511
    %v623 = vunpack.c.l.b16 %v512
    %v624 = vunpack.c.h.b16 %v512
    %v625 = vunpack.c.l.b16 %v513
    %v626 = vunpack.c.h.b16 %v513
    %v627 = vunpack.c.l.b16 %v514
    %v628 = vunpack.c.h.b16 %v514
    %v629 = vpack.c.b16 %v567, %v565
    %v630 = vpack.c.b16 %v568, %v566
    %v631 = vpack.c.b16 %v571, %v569
    %v632 = vpack.c.b16 %v572, %v570
    %v633 = vpack.c.b16 %v575, %v573
    %v634 = vpack.c.b16 %v576, %v574
    %v635 = vpack.c.b16 %v579, %v577
    %v636 = vpack.c.b16 %v580, %v578
    %v637 = vpack.c.b16 %v583, %v581
    %v638 = vpack.c.b16 %v584, %v582
    %v639 = vpack.c.b16 %v587, %v585
    %v640 = vpack.c.b16 %v588, %v586
    %v641 = vpack.c.b16 %v591, %v589
    %v642 = vpack.c.b16 %v592, %v590
    %v643 = vpack.c.b16 %v595, %v593
    %v644 = vpack.c.b16 %v596, %v594
    %v645 = vpack.c.b16 %v599, %v597
    %v646 = vpack.c.b16 %v600, %v598
    %v647 = vpack.c.b16 %v603, %v601
    %v648 = vpack.c.b16 %v604, %v602
    %v649 = vpack.c.b16 %v607, %v605
    %v650 = vpack.c.b16 %v608, %v606
    %v651 = vpack.c.b16 %v611, %v609
    %v652 = vpack.c.b16 %v612, %v610
    %v653 = vpack.c.b16 %v615, %v613
    %v654 = vpack.c.b16 %v616, %v614
    %v655 = vpack.c.b16 %v619, %v617
    %v656 = vpack.c.b16 %v620, %v618
    %v657 = vpack.c.b16 %v623, %v621
    %v658 = vpack.c.b16 %v624, %v622
    %v659 = vpack.c.b16 %v627, %v625
    %v660 = vpack.c.b16 %v628, %v626
    %693 = vmatprep.subr.bf16.mxu0 %v630
    %694 = vmatpush1.bf16.msra.mxu0 %v629
    %695 = vmatprep.subr.bf16.mxu0 %v632
    %696 = vmatpush1.bf16.msra.mxu0 %v631
    %697 = vmatprep.subr.bf16.mxu0 %v634
    %698 = vmatpush1.bf16.msra.mxu0 %v633
    %699 = vmatprep.subr.bf16.mxu0 %v636
    %700 = vmatpush1.bf16.msra.mxu0 %v635
    %701 = vmatprep.subr.bf16.mxu0 %v638
    %702 = vmatpush1.bf16.msra.mxu0 %v637
    %703 = vmatprep.subr.bf16.mxu0 %v640
    %704 = vmatpush1.bf16.msra.mxu0 %v639
    %705 = vmatprep.subr.bf16.mxu0 %v642
    %706 = vmatpush1.bf16.msra.mxu0 %v641
    %707 = vmatprep.subr.bf16.mxu0 %v644
    %708 = vmatpush1.bf16.msra.mxu0 %v643
    %709 = vmatprep.subr.bf16.mxu0 %v646
    %710 = vmatpush1.bf16.msra.mxu0 %v645
    %711 = vmatprep.subr.bf16.mxu0 %v648
    %712 = vmatpush1.bf16.msra.mxu0 %v647
    %713 = vmatprep.subr.bf16.mxu0 %v650
    %714 = vmatpush1.bf16.msra.mxu0 %v649
    %715 = vmatprep.subr.bf16.mxu0 %v652
    %716 = vmatpush1.bf16.msra.mxu0 %v651
    %717 = vmatprep.subr.bf16.mxu0 %v654
    %718 = vmatpush1.bf16.msra.mxu0 %v653
    %719 = vmatprep.subr.bf16.mxu0 %v656
    %720 = vmatpush1.bf16.msra.mxu0 %v655
    %721 = vmatprep.subr.bf16.mxu0 %v658
    %722 = vmatpush1.bf16.msra.mxu0 %v657
    %723 = vmatprep.subr.bf16.mxu0 %v660
    %724 = vmatpush1.bf16.msra.mxu0 %v659
    %725 = vmatprep.mubr.bf16.mxu0 %v228
    %726 = vmatmul.mubr.bf16.gmra.mrb[0].mxu0 %v227
    %v727 = vpop.f32.mrb[0].mxu0
    %v728 = vadd.f32 %v528, %v727
    %v729 = vpop.f32.mrb[0].mxu0
    %v730 = vadd.f32 %v532, %v729
    %v731 = vpop.f32.mrb[0].mxu0
    %v732 = vpop.f32.mrb[0].mxu0
    %733 = vdwg.mxu0
    %v734 = vmax.f32 %v728, 0.0
    %v735 = vmax.f32 %v730, 0.0
    %v736 = vlaneseq
    %v737 = vshrl.u32 %v736, 7
    %v738 = vsub.s32 2, %v737
    %v739 = vrot.slane %v71, %v738
    %v740 = vlaneseq
    %v741 = vshrl.u32 %v740, 7
    %v742 = vsub.s32 6, %v741
    %v743 = vrot.slane %v71, %v742
    %v746 = vlaneseq
    %v747 = vshrl.u32 %v746, 7
    %v748 = vsub.s32 2, %v747
    %v749 = vrot.slane %v739, %v748
    %v750 = vlaneseq
    %v751 = vshrl.u32 %v750, 7
    %v752 = vsub.s32 2, %v751
    %v753 = vrot.slane %v743, %v752
    %v754 = vmul.f32 %v480, %v749
    %v755 = vmul.f32 %v481, %v753
    %v756 = vadd.f32 %v754, %v755
    %757 = vadd.xlane.f32.xlu0 %v756
    %v758 = vpop.xlane.xlu0 %757
    %v759 = vlaneseq
    %v760 = vshrl.u32 %v759, 7
    %v761 = vsub.s32 2, %v760
    %v762 = vrot.slane %v72, %v761
    %v763 = vlaneseq
    %v764 = vshrl.u32 %v763, 7
    %v765 = vsub.s32 6, %v764
    %v766 = vrot.slane %v72, %v765
    %v769 = vlaneseq
    %v770 = vshrl.u32 %v769, 7
    %v771 = vsub.s32 2, %v770
    %v772 = vrot.slane %v762, %v771
    %v773 = vlaneseq
    %v774 = vshrl.u32 %v773, 7
    %v775 = vsub.s32 2, %v774
    %v776 = vrot.slane %v766, %v775
    %v777 = vmul.f32 %v734, %v772
    %v778 = vmul.f32 %v735, %v776
    %v779 = vadd.f32 %v777, %v778
    %780 = vadd.xlane.f32.xlu0 %v779
    %v781 = vpop.xlane.xlu0 %780
    %vm782 = vcmask 7168
    %v783 = vsel %vm782, %v758, %v781
    %v784 = vlaneseq
    %v785 = vshrl.u32 %v784, 7
    %v786 = vsub.s32 3, %v785
    %v787 = vrot.slane %v71, %v786
    %v788 = vadd.f32 %v783, %v787
    %vm789 = vcmask 15360
    %790 = vst.msk [vmem:[%s4] sm:$0xff] %vm789, %v788
    // Predicated region
    $region34: #{tpu_custom_call.1} parent=1 // pred_check
      _
    $region35: #{tpu_custom_call.1} parent=1 // pred_check_branch
      %792 = sbr.rel (0) target = $region37
    $region36: #{tpu_custom_call.1} parent=1 // pred_region
      _
    $region37: #{tpu_custom_call.1} parent=1 // pred_fallthru
      _
    // Predicated region
    $region38: #{tpu_custom_call.1} parent=1 // pred_check
      _
    $region39: #{tpu_custom_call.1} parent=1 // pred_check_branch
      %794 = sbr.rel (0) target = $region41
    $region40: #{tpu_custom_call.1} parent=1 // pred_region
      _
    $region41: #{tpu_custom_call.1} parent=1 // pred_fallthru
      _
    %795 = vsyncpa [#allocation3], 1
    %796 = vsyncpa [#allocation5], 1
    %797 = vsyncpa [#allocation8], 1

</llo_original>
